<compile_context>
chip_gen: v7x
topology: tpu7x:2x2x1
jax: 0.10.0
libtpu: 0.0.40
codegen_flags: <defaults>
</compile_context>

<pallas_src>
from functools import partial

import jax
import jax.numpy as jnp
from jax.experimental import pallas as pl
from jax.experimental.pallas import tpu as pltpu

LEAKY_SLOPE = 0.01  # PyTorch nn.LeakyReLU default negative_slope

_LANES = 128
_TARGET_BLOCK_BYTES = 4 * 1024 * 1024   # ~4 MiB per input block
_SMALL_BYTES = 1 * 1024 * 1024          # below this: single block, no grid loop


def _sublane_multiple(dtype) -> int:
    """Sublane packing granule: 8 for 32-bit, 16 for 16-bit, 32 for 8-bit dtypes."""
    bits = jnp.dtype(dtype).itemsize * 8
    return max(8, (32 // bits) * 8)


def _round_up(n: int, m: int) -> int:
    return ((n + m - 1) // m) * m


def _make_kernel(non_lin: str):
    def kernel(x_ref, o_ref):
        x = x_ref[...]
        if non_lin == "ReLU":
            o_ref[...] = jnp.maximum(x, jnp.zeros_like(x))
        elif non_lin == "LeakyReLU":
            o_ref[...] = jnp.where(x >= 0, x, x * jnp.asarray(LEAKY_SLOPE, x.dtype))
        elif non_lin == "tanh":
            # Transcendental in f32 (EUP); cast back for narrow dtypes.
            if x.dtype != jnp.float32:
                o_ref[...] = jnp.tanh(x.astype(jnp.float32)).astype(o_ref.dtype)
            else:
                o_ref[...] = jnp.tanh(x)
        else:
            raise ValueError(f"unknown non_lin: {non_lin}")
    return kernel


@partial(jax.jit, static_argnames=("non_lin",))
def non_lin_forward(x, non_lin: str = "ReLU"):
    """Apply the selected nonlinearity elementwise via a Pallas TPU kernel.

    x: array of any shape (e.g. NCHW [B, C, H, W]); returns same shape/dtype.
    """
    orig_shape = x.shape
    total = x.size
    if total == 0:
        return x

    dtype = x.dtype
    itemsize = jnp.dtype(dtype).itemsize
    sub = _sublane_multiple(dtype)

    # --- Layout plumbing: present a lane-dense [rows, 128] slab. ---
    if total % _LANES == 0:
        rows = total // _LANES
        x2 = x.reshape(rows, _LANES)
        padded = False
    else:
        rows = -(-total // _LANES)  # ceil
        x2 = jnp.pad(x.reshape(-1), (0, rows * _LANES - total)).reshape(rows, _LANES)
        padded = True

    slab_bytes = rows * _LANES * itemsize

    # --- Tile-size selection. ---
    if slab_bytes <= _SMALL_BYTES:
        # Single block; partial block (rows not a multiple of sub) handled by Pallas.
        tile_r = _round_up(rows, sub)
    else:
        # MiB-scale blocks, but keep >= 2 grid steps for megacore sharding.
        target_rows = max(sub, (_TARGET_BLOCK_BYTES // (itemsize * _LANES)) // sub * sub)
        half_rows = _round_up(-(-rows // 2), sub)
        tile_r = min(target_rows, half_rows)

    grid = (pl.cdiv(rows, tile_r),)

    out2 = pl.pallas_call(
        _make_kernel(non_lin),
        out_shape=jax.ShapeDtypeStruct((rows, _LANES), dtype),
        grid_spec=pltpu.PrefetchScalarGridSpec(
            num_scalar_prefetch=0,
            grid=grid,
            in_specs=[pl.BlockSpec((tile_r, _LANES), lambda i: (i, 0))],
            out_specs=pl.BlockSpec((tile_r, _LANES), lambda i: (i, 0)),
        ),
        compiler_params=pltpu.CompilerParams(
            dimension_semantics=("parallel",),
        ),
    )(x2)

    out_flat = out2.reshape(-1)
    if padded:
        out_flat = out_flat[:total]
    return out_flat.reshape(orig_shape)


if __name__ == "__main__":
    key = jax.random.PRNGKey(0)
    k1, k2, k3 = jax.random.split(key, 3)

    # Small NCHW inputs consistent with the module's usage in a conv pipeline.
    x_main = jax.random.normal(k1, (2, 4, 16, 16), dtype=jnp.float32)   # 128-divisible
    x_odd = jax.random.normal(k2, (2, 3, 7, 5), dtype=jnp.float32)      # pad path
    x_bf16 = jax.random.normal(k3, (2, 4, 16, 16), dtype=jnp.bfloat16)  # packed dtype

    refs = {
        "ReLU": lambda v: jnp.maximum(v, jnp.zeros_like(v)),
        "LeakyReLU": lambda v: jnp.where(v >= 0, v, v * jnp.asarray(LEAKY_SLOPE, v.dtype)),
        "tanh": jnp.tanh,
    }

    ok = True
    for name, ref_fn in refs.items():
        for x in (x_main, x_odd):
            out = jax.block_until_ready(non_lin_forward(x, non_lin=name))
            ref = ref_fn(x)
            if out.shape != x.shape or not jnp.allclose(out, ref, atol=1e-6, rtol=1e-6):
                ok = False
                print(f"MISMATCH for {name} on shape {x.shape}")

    # bf16 tanh (in-kernel f32 compute) check with looser tolerance.
    out_bf = jax.block_until_ready(non_lin_forward(x_bf16, non_lin="tanh"))
    ref_bf = jnp.tanh(x_bf16.astype(jnp.float32)).astype(jnp.bfloat16)
    if not jnp.allclose(out_bf.astype(jnp.float32), ref_bf.astype(jnp.float32),
                        atol=1e-2, rtol=1e-2):
        ok = False
        print("MISMATCH for bf16 tanh")

    if ok:
        print("KERNEL_OK")
</pallas_src>

<mosaic_0001>
module attributes {stable_mosaic.version = 11 : i64} {
  func.func @kernel(%arg0: i32, %arg1: memref<16x128xf32, #tpu.memory_space<vmem>>, %arg2: memref<16x128xf32, #tpu.memory_space<vmem>>) attributes {dimension_semantics = [#tpu.dimension_semantics<parallel>], iteration_bounds = array<i64: 1>, scalar_prefetch = 0 : i64, scratch_operands = 0 : i64, tpu.core_type = #tpu.core_type<tc>, window_params = [{transform_indices = @transform_0, window_bounds = array<i64: 16, 128>}, {transform_indices = @transform_1, window_bounds = array<i64: 16, 128>}]} {
    %c0 = arith.constant 0 : index
    %c0_0 = arith.constant 0 : index
    %0 = vector.load %arg1[%c0, %c0_0] : memref<16x128xf32, #tpu.memory_space<vmem>>, vector<16x128xf32>
    %cst = arith.constant 0.000000e+00 : f32
    %1 = vector.broadcast %cst : f32 to vector<16x128xf32>
    %2 = arith.maximumf %0, %1 : vector<16x128xf32>
    %c0_1 = arith.constant 0 : index
    %c0_2 = arith.constant 0 : index
    %3 = vector.load %arg2[%c0_1, %c0_2] : memref<16x128xf32, #tpu.memory_space<vmem>>, vector<16x128xf32>
    tpu.vector_store %arg2[%c0_1, %c0_2], %2 {strides = array<i32>} : memref<16x128xf32, #tpu.memory_space<vmem>>, vector<16x128xf32>,
    return
  }
  func.func @transform_0(%arg0: i32) -> (i32, i32) {
    %c0_i32 = arith.constant 0 : i32
    %c0_i32_0 = arith.constant 0 : i32
    return %arg0, %c0_i32 : i32, i32
  }
  func.func @transform_1(%arg0: i32) -> (i32, i32) {
    %c0_i32 = arith.constant 0 : i32
    %c0_i32_0 = arith.constant 0 : i32
    return %arg0, %c0_i32 : i32, i32
  }
}

</mosaic_0001>

<llo_original>
// kernel: non_lin_forward.1
$region0: #{non_lin_forward.1}
  #allocation0 [shape = 'u32[]', space=smem, size = 0x4, offset = 0x4, fixed_abs, tag = 'smem constant byte address 0x4 - core index']
  #allocation1 [shape = 'u32[144,128]{1,0:T(1,128)}', space=vmem, size = 0x12000, scoped, tag = 'internal scratch']
  %s0 = inlined_call_operand.vmem [shape: f32[16,128], index: 0, kind: input, shape index: {}]
  %s1 = inlined_call_operand.vmem [shape: f32[16,128], index: 1, kind: output, shape index: {}]
  %s2 = sld [smem:[#allocation0]]
  $region14: #{non_lin_forward.1} parent=0
    _
  %s4 = ssub.s32 1, %s2
  %s5 = scalar_select 0, %s4, %s2
  // Predicated region
  $region2: #{non_lin_forward.1} parent=0 // pred_check
    _
  $region3: #{non_lin_forward.1} parent=0 // pred_check_branch
    %7 = sbr.rel (0) target = $region5
  $region4: #{non_lin_forward.1} parent=0 // pred_region
    _
  $region5: #{non_lin_forward.1} parent=0 // pred_fallthru
    _
  %v8 = vld [vmem:[%s0] sm:$0xff]
  %v9 = vld [vmem:[%s0 + $0x8] sm:$0xff]
  %v10 = vmax.f32 %v8, 0.0
  %v11 = vmax.f32 %v9, 0.0
  %12 = vst [vmem:[%s1] sm:$0xff] %v10
  %13 = vst [vmem:[%s1 + $0x8] sm:$0xff] %v11
  // Predicated region
  $region6: #{non_lin_forward.1} parent=0 // pred_check
    _
  $region7: #{non_lin_forward.1} parent=0 // pred_check_branch
    %15 = sbr.rel (0) target = $region9
  $region8: #{non_lin_forward.1} parent=0 // pred_region
    _
  $region9: #{non_lin_forward.1} parent=0 // pred_fallthru
    _
  // Predicated region
  $region10: #{non_lin_forward.1} parent=0 // pred_check
    _
  $region11: #{non_lin_forward.1} parent=0 // pred_check_branch
    %17 = sbr.rel (0) target = $region13
  $region12: #{non_lin_forward.1} parent=0 // pred_region
    _
  $region13: #{non_lin_forward.1} parent=0 // pred_fallthru
    _

</llo_original>
